<compile_context>
chip_gen: v7x
topology: tpu7x:2x2x1
jax: 0.10.0
libtpu: 0.0.40
codegen_flags: <defaults>
</compile_context>

<pallas_src>
import functools

import jax
import jax.numpy as jnp
from jax import lax
from jax.experimental import pallas as pl
from jax.experimental.pallas import tpu as pltpu


_LOG_FLOOR = 1e-30   # guards log(0) if a whole row/column of exps underflows


# ---------------------------------------------------------------------------
# prologue kernel: normalize (optionally) + cast zjs to the matmul dtype once.
# ---------------------------------------------------------------------------
def _normalize_cast_kernel(x_ref, o_ref, *, normalize):
    x = x_ref[...].astype(jnp.float32)
    if normalize:
        # F.normalize(p=2, dim=1, eps=1e-12) == x * rsqrt(max(sum(x^2), eps^2))
        inv_n = lax.rsqrt(jnp.maximum(
            jnp.sum(x * x, axis=1, keepdims=True), 1e-24))
        x = x * inv_n
    o_ref[...] = x.astype(o_ref.dtype)


# ---------------------------------------------------------------------------
# main kernel: one zis row block per grid step.  Emits purely additive
# per-block partials (no carried scratch) combined by a tiny JAX epilogue.
# ---------------------------------------------------------------------------
def _clip_partials_kernel(zis_ref, zjsn_ref,
                          colsum_ref, colshift_ref, rowacc_ref, diagacc_ref,
                          *, inv_temp, normalize, mm_dtype):
    i = pl.program_id(0)
    tm = zis_ref.shape[0]

    # normalize this zis row block in f32 and fold 1/T into it so the (tm, B)
    # logits never see a divide.
    zis = zis_ref[...].astype(jnp.float32)
    if normalize:
        inv_n = lax.rsqrt(jnp.maximum(
            jnp.sum(zis * zis, axis=1, keepdims=True), 1e-24))
        zis = zis * inv_n
    zis_s = zis * inv_temp                                        # (tm, D) f32

    # diagonal of this logits block via a row-wise dot with the matching zjs
    # rows (O(tm*D); no iota masks / masked full-matrix reductions).
    row0 = pl.multiple_of(i * tm, tm)
    zjs_diag = zjsn_ref[pl.ds(row0, tm), :].astype(jnp.float32)   # (tm, D)
    diag = jnp.sum(zis_s * zjs_diag, axis=1, keepdims=True)       # (tm, 1)

    # logits block: contract the last dims of both operands (no transpose);
    # mm_dtype operands on the MXU with f32 accumulation.
    prec = lax.Precision.HIGHEST if mm_dtype == jnp.float32 else None
    logits = lax.dot_general(
        zis_s.astype(mm_dtype), zjsn_ref[...],
        dimension_numbers=(((1,), (1,)), ((), ())),
        precision=prec,
        preferred_element_type=jnp.float32)                       # (tm, B)

    if normalize:
        # unit-norm rows => |logits| <= 1/T: compile-time constant shift.
        # No row/col max reductions (XLU), no rescale multiplies, one exp,
        # and the partials are purely additive across row blocks.
        e = jnp.exp(logits - inv_temp)                            # (tm, B)
        lse_r = jnp.log(jnp.maximum(jnp.sum(e, axis=1, keepdims=True),
                                    _LOG_FLOOR)) + inv_temp       # (tm, 1)
        col_sum = jnp.sum(e, axis=0, keepdims=True)               # (1, B)
        col_shift = jnp.full_like(col_sum, inv_temp)
        # TODO(synk): for small D on v6e/v7x the single EUP exp pipe binds,
        # not the MXU; a bf16 exp and/or a ones(1,tm)@e MXU column-reduce
        # would relieve it (skipped here to preserve f32 accuracy).
    else:
        # unnormalized inputs: overflow-safe per-row / per-column max shifts
        # (every exp argument <= 0); blocks are combined stably in the
        # epilogue via the emitted per-block column shifts.
        m_r = jnp.max(logits, axis=1, keepdims=True)
        e_r = jnp.exp(logits - m_r)
        lse_r = jnp.log(jnp.maximum(jnp.sum(e_r, axis=1, keepdims=True),
                                    _LOG_FLOOR)) + m_r
        m_c = jnp.max(logits, axis=0, keepdims=True)
        e_c = jnp.exp(logits - m_c)
        col_sum = jnp.sum(e_c, axis=0, keepdims=True)
        col_shift = m_c

    colsum_ref[...] = col_sum.reshape(colsum_ref.shape)
    colshift_ref[...] = col_shift.reshape(colshift_ref.shape)
    rowacc_ref[...] = jnp.sum(lse_r - diag, axis=0,
                              keepdims=True).reshape(rowacc_ref.shape)
    diagacc_ref[...] = jnp.sum(diag, axis=0,
                               keepdims=True).reshape(diagacc_ref.shape)


# ---------------------------------------------------------------------------
# VMEM-aware sizing helpers
# ---------------------------------------------------------------------------
def _vmem_capacity_bytes():
    try:
        info = pltpu.get_tpu_info()
        cap = int(getattr(info, "vmem_capacity_bytes", 0) or 0)
        if cap > 0:
            return cap
    except Exception:
        pass
    return 64 * 1024 * 1024   # conservative default (v7x per-TensorCore VMEM)


def _clamp_vmem_limit(est_bytes, vmem_cap):
    hi = max(vmem_cap - (4 << 20), 16 << 20)          # physical cap - headroom
    return int(min(max(2 * est_bytes, 32 << 20), hi))


def _pick_block_rows(B, D, mm_itemsize, in_itemsize, vmem_cap):
    """Largest MXU-friendly row tile that divides B and keeps the per-step
    (tm, B) f32 temporaries + tiles inside the chip's VMEM budget."""
    budget = max(vmem_cap - (12 << 20), 16 << 20)
    resident = 2 * B * D * mm_itemsize + 4 * (2 * B * 4 + 64)
    avail = max(budget - resident, 4 << 20)
    per_row = 2 * B * 4 + 2 * D * in_itemsize + 6 * D * 4
    cap_rows = max(avail // per_row, 8)
    for t in (512, 256, 128, 64, 32, 16, 8):
        if t <= cap_rows and t <= B and B % t == 0:
            return t
    # TODO(synk): pad ragged / non-multiple-of-8 B with masked rows (kept
    # lane-dense) instead of falling back to a single full-B block.
    return B


def _pick_prologue_rows(B, D, vmem_cap):
    budget = max(vmem_cap // 4, 8 << 20)
    per_row = 2 * D * 8 + 64
    cap_rows = max(budget // per_row, 8)
    for t in (2048, 1024, 512, 256, 128, 64, 32, 16, 8):
        if t <= cap_rows and t <= B and B % t == 0:
            return t
    return B


def _normalize_cast(zjs, mm_dtype, normalize, vmem_cap):
    B, D = zjs.shape
    if not normalize and zjs.dtype == mm_dtype:
        return zjs
    tr = _pick_prologue_rows(B, D, vmem_cap)
    est = 2 * tr * D * (zjs.dtype.itemsize + mm_dtype.itemsize) + (1 << 20)
    return pl.pallas_call(
        functools.partial(_normalize_cast_kernel, normalize=bool(normalize)),
        out_shape=jax.ShapeDtypeStruct((B, D), mm_dtype),
        grid_spec=pltpu.PrefetchScalarGridSpec(
            num_scalar_prefetch=0,
            grid=(B // tr,),
            in_specs=[pl.BlockSpec((tr, D), lambda i: (i, 0))],
            out_specs=pl.BlockSpec((tr, D), lambda i: (i, 0)),
        ),
        compiler_params=pltpu.CompilerParams(
            dimension_semantics=("parallel",),
            vmem_limit_bytes=_clamp_vmem_limit(est, vmem_cap)),
    )(zjs)


# ---------------------------------------------------------------------------
# public entry point
# ---------------------------------------------------------------------------
def clip_loss(zis, zjs, temperature, alpha_weight, norm=True,
              mm_dtype=jnp.bfloat16, block_rows=None):
    """Pallas ClipLoss forward.  temperature / alpha_weight are fixed at
    module construction in the PyTorch spec -> compile-time constants."""
    B, D = zis.shape
    assert zjs.shape == (B, D)
    inv_temp = 1.0 / float(temperature)
    alpha = float(alpha_weight)
    mm_dtype = jnp.dtype(mm_dtype)
    vmem_cap = _vmem_capacity_bytes()

    # prologue: one mm_dtype copy of (normalized) zjs; main kernel never
    # re-normalizes / re-casts the full (B, D) block per grid step.
    zjs_n = _normalize_cast(zjs, mm_dtype, bool(norm), vmem_cap)

    tm = block_rows if block_rows is not None else _pick_block_rows(
        B, D, mm_dtype.itemsize, zis.dtype.itemsize, vmem_cap)
    assert B % tm == 0, (B, tm)
    nrb = B // tm

    est = (2 * B * D * mm_dtype.itemsize          # resident zjs_n block
           + 2 * tm * D * zis.dtype.itemsize      # zis tiles (double-buffered)
           + 2 * tm * B * 4                       # logits + e f32 temporaries
           + 6 * tm * D * 4                       # f32 zis / diag temporaries
           + 4 * (2 * B * 4 + 64)                 # per-block output blocks
           + (1 << 20))

    kernel = functools.partial(
        _clip_partials_kernel,
        inv_temp=inv_temp, normalize=bool(norm), mm_dtype=mm_dtype)

    colsum, colshift, rowacc, diagacc = pl.pallas_call(
        kernel,
        out_shape=(
            jax.ShapeDtypeStruct((nrb, 1, B), jnp.float32),  # per-block col sums
            jax.ShapeDtypeStruct((nrb, 1, B), jnp.float32),  # per-block col shifts
            jax.ShapeDtypeStruct((nrb, 1, 1), jnp.float32),  # sum(lse_r - diag)
            jax.ShapeDtypeStruct((nrb, 1, 1), jnp.float32),  # sum(diag)
        ),
        grid_spec=pltpu.PrefetchScalarGridSpec(
            num_scalar_prefetch=0,
            grid=(nrb,),
            in_specs=[
                pl.BlockSpec((tm, D), lambda i: (i, 0)),     # zis row tile
                pl.BlockSpec((B, D), lambda i: (0, 0)),      # zjs_n, resident
            ],
            out_specs=[
                pl.BlockSpec((1, 1, B), lambda i: (i, 0, 0)),
                pl.BlockSpec((1, 1, B), lambda i: (i, 0, 0)),
                pl.BlockSpec((1, 1, 1), lambda i: (i, 0, 0)),
                pl.BlockSpec((1, 1, 1), lambda i: (i, 0, 0)),
            ],
        ),
        compiler_params=pltpu.CompilerParams(
            # no cross-row-block carried state -> truly parallel axis
            # (megacore sharding on v7x; measured no-op on single-TC v5e/v6e).
            dimension_semantics=("parallel",),
            vmem_limit_bytes=_clamp_vmem_limit(est, vmem_cap),
        ),
    )(zis, zjs_n)
    # TODO(synk): for contrastive-scale B (>~8K on 64 MiB v7x) add a zjs
    # column-block grid axis so residency becomes O(tm*D + tn*D + tm*tn + B).

    # ---- tiny combine: O(nrb * B) work ----
    colsum = colsum.reshape(nrb, B)
    if norm:
        col_total = jnp.sum(colsum, axis=0)
        lse_c = jnp.log(jnp.maximum(col_total, _LOG_FLOOR)) + inv_temp
    else:
        colshift = colshift.reshape(nrb, B)
        m = jnp.max(colshift, axis=0)
        col_total = jnp.sum(jnp.exp(colshift - m) * colsum, axis=0)
        lse_c = jnp.log(jnp.maximum(col_total, _LOG_FLOOR)) + m
    sum_diag = jnp.sum(diagacc)
    loss_r = jnp.sum(rowacc) / B
    loss_c = (jnp.sum(lse_c) - sum_diag) / B
    return alpha * loss_r + (1.0 - alpha) * loss_c


# ---------------------------------------------------------------------------
# pure-JAX reference (mirrors the PyTorch forward)
# ---------------------------------------------------------------------------
def clip_loss_ref(zis, zjs, temperature, alpha_weight, norm=True):
    if norm:
        zis = zis / jnp.maximum(jnp.linalg.norm(zis, axis=1, keepdims=True), 1e-12)
        zjs = zjs / jnp.maximum(jnp.linalg.norm(zjs, axis=1, keepdims=True), 1e-12)
    logits = jnp.matmul(zis, zjs.T, precision=lax.Precision.HIGHEST) / temperature
    B = logits.shape[0]
    idx = jnp.arange(B)

    def ce(lg):
        lse = jax.scipy.special.logsumexp(lg, axis=1)
        return jnp.mean(lse - lg[idx, idx])

    return alpha_weight * ce(logits) + (1.0 - alpha_weight) * ce(logits.T)


if __name__ == "__main__":
    temperature = 0.1
    alpha_weight = 0.75

    key = jax.random.PRNGKey(0)
    k1, k2, k3, k4 = jax.random.split(key, 4)

    # small shape consistent with the module: batch=8, hidden=32
    B, D = 8, 32
    zis = jax.random.normal(k1, (B, D), dtype=jnp.float32)
    zjs = jax.random.normal(k2, (B, D), dtype=jnp.float32)
    ref = clip_loss_ref(zis, zjs, temperature, alpha_weight)

    # f32-operand matmul path
    loss_f32 = jax.block_until_ready(
        clip_loss(zis, zjs, temperature, alpha_weight, mm_dtype=jnp.float32))
    assert jnp.allclose(loss_f32, ref, rtol=1e-3, atol=1e-3), (loss_f32, ref)

    # bf16-operand MXU path (default; native on v5e/v6e/v7x)
    loss_bf16 = jax.block_until_ready(
        clip_loss(zis, zjs, temperature, alpha_weight))
    assert jnp.allclose(loss_bf16, ref, rtol=5e-2, atol=5e-2), (loss_bf16, ref)

    # multi-row-block path: exercises the per-block partials + JAX combine
    B2, D2 = 64, 32
    zis2 = jax.random.normal(k3, (B2, D2), dtype=jnp.float32)
    zjs2 = jax.random.normal(k4, (B2, D2), dtype=jnp.float32)
    ref2 = clip_loss_ref(zis2, zjs2, temperature, alpha_weight)
    loss2 = jax.block_until_ready(
        clip_loss(zis2, zjs2, temperature, alpha_weight,
                  mm_dtype=jnp.float32, block_rows=16))
    assert jnp.allclose(loss2, ref2, rtol=1e-3, atol=1e-3), (loss2, ref2)

    # norm=False path: overflow-safe max shifts + stable cross-block combine
    ref3 = clip_loss_ref(zis, zjs, temperature, alpha_weight, norm=False)
    loss3 = jax.block_until_ready(
        clip_loss(zis, zjs, temperature, alpha_weight, norm=False,
                  mm_dtype=jnp.float32))
    assert jnp.allclose(loss3, ref3, rtol=1e-3, atol=1e-3), (loss3, ref3)

    print("KERNEL_OK")
</pallas_src>

<mosaic_0001>
module attributes {stable_mosaic.version = 11 : i64} {
  func.func @_normalize_cast_kernel(%arg0: i32, %arg1: memref<8x32xf32, #tpu.memory_space<vmem>>, %arg2: memref<8x32xf32, #tpu.memory_space<vmem>>) attributes {dimension_semantics = [#tpu.dimension_semantics<parallel>], iteration_bounds = array<i64: 1>, scalar_prefetch = 0 : i64, scratch_operands = 0 : i64, tpu.core_type = #tpu.core_type<tc>, window_params = [{transform_indices = @transform_0, window_bounds = array<i64: 8, 32>}, {transform_indices = @transform_1, window_bounds = array<i64: 8, 32>}]} {
    %c0 = arith.constant 0 : index
    %c0_0 = arith.constant 0 : index
    %0 = vector.load %arg1[%c0, %c0_0] : memref<8x32xf32, #tpu.memory_space<vmem>>, vector<8x32xf32>
    %1 = arith.mulf %0, %0 : vector<8x32xf32>
    %cst = arith.constant dense<0.000000e+00> : vector<8xf32>
    %2 = vector.multi_reduction <add>, %1, %cst [1] : vector<8x32xf32> to vector<8xf32>
    %3 = vector.shape_cast %2 : vector<8xf32> to vector<8x1xf32>
    %cst_1 = arith.constant 1.000000e-24 : f32
    %4 = vector.broadcast %cst_1 : f32 to vector<8x1xf32>
    %5 = arith.maximumf %3, %4 : vector<8x1xf32>
    %6 = math.rsqrt %5 : vector<8x1xf32>
    %7 = vector.broadcast %6 : vector<8x1xf32> to vector<8x32xf32>
    %8 = arith.mulf %0, %7 : vector<8x32xf32>
    %c0_2 = arith.constant 0 : index
    %c0_3 = arith.constant 0 : index
    %9 = vector.load %arg2[%c0_2, %c0_3] : memref<8x32xf32, #tpu.memory_space<vmem>>, vector<8x32xf32>
    tpu.vector_store %arg2[%c0_2, %c0_3], %8 {strides = array<i32>} : memref<8x32xf32, #tpu.memory_space<vmem>>, vector<8x32xf32>,
    return
  }
  func.func @transform_0(%arg0: i32) -> (i32, i32) {
    %c0_i32 = arith.constant 0 : i32
    %c0_i32_0 = arith.constant 0 : i32
    return %arg0, %c0_i32 : i32, i32
  }
  func.func @transform_1(%arg0: i32) -> (i32, i32) {
    %c0_i32 = arith.constant 0 : i32
    %c0_i32_0 = arith.constant 0 : i32
    return %arg0, %c0_i32 : i32, i32
  }
}

</mosaic_0001>

<llo_original>
// kernel: tpu_custom_call.1
$region0: #{tpu_custom_call.1}
  #allocation0 [shape = 'u32[]', space=smem, size = 0x4, offset = 0x4, fixed_abs, tag = 'smem constant byte address 0x4 - core index']
  #allocation1 [shape = 'u32[144,128]{1,0:T(1,128)}', space=vmem, size = 0x12000, scoped, tag = 'internal scratch']
  %s0 = inlined_call_operand.hbm [shape: f32[8,32], index: 0, kind: input, shape index: {}]
  %s1 = inlined_call_operand.hbm [shape: f32[8,32], index: 1, kind: output, shape index: {}]
  %s2 = sld [smem:[#allocation0]]
  $region18: #{tpu_custom_call.1} parent=0
    _
  %s4 = ssub.s32 1, %s2
  %s5 = scalar_select 0, %s4, %s2
  $region1: #{tpu_custom_call.1} parent=0
    #allocation2 [shape = 'u8[4096]{0}', space=vmem, size = 0x1000, scoped, tag = 'input window, operand 0, single buffered']
    #allocation3 [shape = 's32[1]{0}', space=sflag, size = 0x4, scoped, tag = 'scoped memory for tpu_custom_call.1']
    #allocation4 [shape = 's32[1]{0}', space=sflag, size = 0x4, scoped, tag = 'scoped memory for tpu_custom_call.1']
    #allocation5 [shape = 'u8[4096]{0}', space=vmem, size = 0x1000, scoped, tag = 'output window, operand 0, single buffered']
    %6 = vsyncpa [#allocation3], 0
    %7 = vsyncpa [#allocation4], 0
    // Predicated region
    $region2: #{tpu_custom_call.1} parent=1 // pred_check
      _
    $region3: #{tpu_custom_call.1} parent=1 // pred_check_branch
      %9 = sbr.rel (0) target = $region5
    $region4: #{tpu_custom_call.1} parent=1 // pred_region
      %s11 = ssub.s32 128, 128
      %12 = vsyncadd [#allocation3], %s11
      %s14 = sshll.u32 [#allocation2], 4
      %s15 = int_to_ptr.vmem [resolvable:$true] %s14
      %17 = dma.hbm_to_vmem [thread:$0]  %s0, 128, %s15, [#allocation3]
    $region5: #{tpu_custom_call.1} parent=1 // pred_fallthru
      _
    // Predicated region
    $region6: #{tpu_custom_call.1} parent=1 // pred_check
      _
    $region7: #{tpu_custom_call.1} parent=1 // pred_check_branch
      %19 = sbr.rel (0) target = $region9
    $region8: #{tpu_custom_call.1} parent=1 // pred_region
      %20 = dma.done [#allocation3], 128
    $region9: #{tpu_custom_call.1} parent=1 // pred_fallthru
      _
    %v21 = vld [vmem:[#allocation2] sm:$0xff]
    %v22 = vmul.f32 %v21, %v21
    %vm23 = vcmask 261120
    %v24 = vsel %vm23, %v22, 0.0
    %25 = vadd.xlane.f32.xlu0 %v24
    %v26 = vpop.xlane.xlu0 %25
    %v27 = vmax.f32 %v26, 1e-24
    %v28 = vrsqrt.pop %v27
    %v29 = vmul.f32 %v21, %v28
    %30 = vst.msk [vmem:[#allocation5] sm:$0xff] %vm23, %v29
    // Predicated region
    $region10: #{tpu_custom_call.1} parent=1 // pred_check
      _
    $region11: #{tpu_custom_call.1} parent=1 // pred_check_branch
      %32 = sbr.rel (0) target = $region13
    $region12: #{tpu_custom_call.1} parent=1 // pred_region
      %s34 = ssub.s32 128, 128
      %35 = vsyncadd [#allocation4], %s34
      %s37 = sshll.u32 [#allocation5], 4
      %s38 = int_to_ptr.vmem [resolvable:$true] %s37
      %40 = dma.vmem_to_hbm [thread:$0]  %s38, 128, %s1, [#allocation4]
    $region13: #{tpu_custom_call.1} parent=1 // pred_fallthru
      _
    // Predicated region
    $region14: #{tpu_custom_call.1} parent=1 // pred_check
      _
    $region15: #{tpu_custom_call.1} parent=1 // pred_check_branch
      %42 = sbr.rel (0) target = $region17
    $region16: #{tpu_custom_call.1} parent=1 // pred_region
      %43 = dma.done [#allocation4], 128
    $region17: #{tpu_custom_call.1} parent=1 // pred_fallthru
      _
    %44 = vsyncpa [#allocation3], 1
    %45 = vsyncpa [#allocation4], 1

</llo_original>
